<compile_context>
chip_gen: v7x
topology: tpu7x:2x2x1
jax: 0.10.0
libtpu: 0.0.40
codegen_flags: <defaults>
</compile_context>

<pallas_src>
import functools

import jax
import jax.numpy as jnp
from jax import lax
from jax.experimental import pallas as pl
from jax.experimental.pallas import tpu as pltpu

LANES = 128  # vreg lane width


def _vmem_capacity_bytes():
    try:
        return int(pltpu.get_tpu_info().vmem_capacity_bytes)
    except Exception:
        return 64 * 1024 * 1024  # conservative fallback (v7x per-TC VMEM)


def _sum_squares(x_ref, n_rows, chunk, *, mask_rows=None, row_offset=None):
    """(1, L) f32 per-lane sum of x**2 over the first n_rows rows of a 2-D ref.

    If mask_rows is given, rows whose global index (row_offset + local row) is
    >= mask_rows contribute zero (handles ragged last tiles without HBM padding).
    """
    L = x_ref.shape[-1]

    def one(off, size):
        xb = x_ref[pl.ds(off, size), :].astype(jnp.float32)
        if mask_rows is not None:
            rid = row_offset + off + lax.broadcasted_iota(jnp.int32, (size, L), 0)
            xb = jnp.where(rid < mask_rows, xb, 0.0)
        return jnp.sum(xb * xb, axis=0, keepdims=True)

    n_full, rem = divmod(n_rows, chunk)
    acc = jnp.zeros((1, L), jnp.float32)
    if n_full > 0:
        def body(i, a):
            return a + one(pl.multiple_of(i * chunk, chunk), chunk)
        acc = lax.fori_loop(0, n_full, body, acc)
    if rem:
        acc = acc + one(n_full * chunk, rem)
    return acc


def _scale_rows(x_ref, s_ref, o_ref, inv, n_rows, chunk):
    """o = (x * scale * inv) over n_rows rows; f32 compute, cast only at the store."""
    def one(off, size):
        xb = x_ref[pl.ds(off, size), :].astype(jnp.float32)
        sb = s_ref[pl.ds(off, size), :].astype(jnp.float32)
        o_ref[pl.ds(off, size), :] = (xb * sb * inv).astype(o_ref.dtype)

    n_full, rem = divmod(n_rows, chunk)
    if n_full > 0:
        def body(i, c):
            one(pl.multiple_of(i * chunk, chunk), chunk)
            return c
        lax.fori_loop(0, n_full, body, 0)
    if rem:
        one(n_full * chunk, rem)


# ------------------------------ fused single pass -----------------------------

def _fused_kernel(x_ref, s_ref, o_ref, *, numel, chunk):
    rows = x_ref.shape[0]
    ssq = _sum_squares(x_ref, rows, chunk)               # (1, L) per-lane partials
    inv = lax.rsqrt(jnp.sum(ssq) * (1.0 / numel))        # 1/ff_rms (EUP rsqrt)
    _scale_rows(x_ref, s_ref, o_ref, inv, rows, chunk)   # second x read is VMEM-only


def _rmsnorm_fused(xv, sv, *, numel, chunk, vmem_limit):
    B, R, L = xv.shape
    io = jnp.dtype(xv.dtype).itemsize
    return pl.pallas_call(
        functools.partial(_fused_kernel, numel=numel, chunk=chunk),
        out_shape=jax.ShapeDtypeStruct((B, R, L), xv.dtype),
        grid_spec=pltpu.PrefetchScalarGridSpec(
            num_scalar_prefetch=0,
            grid=(B,),
            in_specs=[
                pl.BlockSpec((None, R, L), lambda b: (b, 0, 0)),   # per-batch x slab
                pl.BlockSpec((R, L), lambda b: (0, 0)),            # scale (resident)
            ],
            out_specs=pl.BlockSpec((None, R, L), lambda b: (b, 0, 0)),
        ),
        compiler_params=pltpu.CompilerParams(
            dimension_semantics=("parallel",),
            vmem_limit_bytes=vmem_limit),
        cost_estimate=pl.CostEstimate(
            flops=5 * B * R * L, transcendentals=B,
            bytes_accessed=2 * B * R * L * io + R * L * io),
    )(xv, sv)


# ---------------------------- two-pass fallback path ---------------------------

def _reduce_kernel(x_ref, part_ref, *, valid_rows, chunk, masked):
    t = pl.program_id(1)

    @pl.when(t == 0)
    def _():
        part_ref[...] = jnp.zeros_like(part_ref)

    tr = x_ref.shape[0]
    if masked:
        part_ref[...] += _sum_squares(x_ref, tr, chunk,
                                      mask_rows=valid_rows, row_offset=t * tr)
    else:
        part_ref[...] += _sum_squares(x_ref, tr, chunk)


def _apply_kernel(part_ref, x_ref, s_ref, o_ref, *, numel, chunk):
    # Fold the tiny final reduce + rsqrt here (per-tile, essentially free on the EUP).
    inv = lax.rsqrt(jnp.sum(part_ref[...]) * (1.0 / numel))
    _scale_rows(x_ref, s_ref, o_ref, inv, x_ref.shape[0], chunk)


def _rmsnorm_two_pass(xv, sv, *, numel, reduce_rows, apply_rows, chunk, budget):
    B, R, L = xv.shape
    io = jnp.dtype(xv.dtype).itemsize

    # v7x megacore: at B == 1 split the reduction rows into two "parallel" halves so
    # both TensorCores work on pass 0 (harmless / no effect on single-core v5e/v6e).
    n_split = 2 if (B == 1 and R % 2 == 0 and R >= 16) else 1
    G = B * n_split
    Rr = R // n_split
    xr = xv.reshape(G, Rr, L)  # free, row-major-preserving reshape

    tr0 = Rr if Rr <= reduce_rows else max(8, (reduce_rows // 8) * 8)
    num_t0 = pl.cdiv(Rr, tr0)
    masked = (Rr % tr0) != 0   # ragged last tile -> mask in-kernel, never pad in HBM

    vmem0 = int(min(max(2 * tr0 * L * io + 8 * chunk * L * 4 + (4 << 20),
                        16 << 20), budget))
    partials = pl.pallas_call(
        functools.partial(_reduce_kernel, valid_rows=Rr, chunk=chunk, masked=masked),
        out_shape=jax.ShapeDtypeStruct((G, 1, L), jnp.float32),
        grid_spec=pltpu.PrefetchScalarGridSpec(
            num_scalar_prefetch=0,
            grid=(G, num_t0),                                   # reduction axis innermost
            in_specs=[pl.BlockSpec((None, tr0, L), lambda g, t: (g, t, 0))],
            out_specs=pl.BlockSpec((None, 1, L), lambda g, t: (g, 0, 0)),
        ),
        compiler_params=pltpu.CompilerParams(
            dimension_semantics=("parallel", "arbitrary"),
            vmem_limit_bytes=vmem0),
        cost_estimate=pl.CostEstimate(
            flops=2 * B * R * L, transcendentals=0,
            bytes_accessed=B * R * L * io + G * L * 4),
    )(xr)

    parts = partials.reshape(B, n_split, L)  # tiny, free reshape

    tr1 = R if R <= apply_rows else max(8, (apply_rows // 8) * 8)
    num_t1 = pl.cdiv(R, tr1)

    vmem1 = int(min(max(2 * 3 * tr1 * L * io + 2 * n_split * L * 4
                        + 8 * chunk * L * 4 + (4 << 20), 16 << 20), budget))
    out = pl.pallas_call(
        functools.partial(_apply_kernel, numel=numel, chunk=chunk),
        out_shape=jax.ShapeDtypeStruct((B, R, L), xv.dtype),
        grid_spec=pltpu.PrefetchScalarGridSpec(
            num_scalar_prefetch=0,
            grid=(num_t1, B),                       # b innermost: scale tile reused across batch
            in_specs=[
                pl.BlockSpec((None, n_split, L), lambda t, b: (b, 0, 0)),  # per-lane partials
                pl.BlockSpec((None, tr1, L), lambda t, b: (b, t, 0)),      # x tile
                pl.BlockSpec((tr1, L), lambda t, b: (t, 0)),               # scale tile
            ],
            out_specs=pl.BlockSpec((None, tr1, L), lambda t, b: (b, t, 0)),
        ),
        compiler_params=pltpu.CompilerParams(
            dimension_semantics=("parallel", "parallel"),
            vmem_limit_bytes=vmem1),
        cost_estimate=pl.CostEstimate(
            flops=3 * B * R * L, transcendentals=B * num_t1,
            bytes_accessed=2 * B * R * L * io + R * L * io + B * n_split * L * 4),
    )(parts, xv, sv)
    return out


# ------------------------------------ API -------------------------------------

def rmsnorm(x, scale, *, reduce_block_rows=8192, apply_block_rows=4096,
            chunk_rows=256, force_two_pass=False):
    """x: (B, S, D); scale: (S, D) (already sliced to seq_len, as the forward does)."""
    B, S, D = x.shape
    assert scale.shape == (S, D)
    numel = S * D

    if scale.dtype != x.dtype:
        scale = scale.astype(x.dtype)  # stream the (read-once) scale at activation width

    # No-pad layout: lane-dense (rows, 128) view when it's a free reshape, else raw (S, D).
    if numel % LANES == 0:
        R, L = numel // LANES, LANES
        xv = x.reshape(B, R, L)
        sv = scale.reshape(R, L)
    else:
        R, L = S, D
        xv, sv = x, scale

    io = jnp.dtype(x.dtype).itemsize
    budget = (_vmem_capacity_bytes() * 3) // 4   # ~48 MiB on v7x, ~96 MiB on v5e/v6e
    chunk = max(8, min(chunk_rows, 8192))

    # Fused single pass if x/scale/out per-batch slabs (double-buffered) + temps fit VMEM.
    fused_working = 2 * 3 * R * L * io + 8 * chunk * L * 4 + (2 << 20)
    if not force_two_pass and fused_working <= budget:
        vmem_limit = int(min(max(fused_working + (4 << 20), 16 << 20), budget))
        out_v = _rmsnorm_fused(xv, sv, numel=numel, chunk=chunk, vmem_limit=vmem_limit)
    else:
        out_v = _rmsnorm_two_pass(xv, sv, numel=numel,
                                  reduce_rows=reduce_block_rows,
                                  apply_rows=apply_block_rows,
                                  chunk=chunk, budget=budget)
    return out_v.reshape(B, S, D)


if __name__ == "__main__":
    key = jax.random.PRNGKey(0)
    k1, k2, k3, k4, k5 = jax.random.split(key, 5)

    def reference(x, scale):
        b = x.shape[0]
        xf = x.astype(jnp.float32)
        ff_rms = jnp.linalg.norm(xf.reshape(b, -1), axis=-1) * (x[0].size ** (-0.5))
        return scale.astype(jnp.float32)[None, :, :] * (xf / ff_rms[:, None, None])

    # --- Test 1: required small shape (batch=2, seq=8, hidden=32): fused lane-dense path.
    B, S, D = 2, 8, 32
    x = jax.random.normal(k1, (B, S, D), dtype=jnp.float32)
    scale = 1.0 + 0.1 * jax.random.normal(k2, (S, D), dtype=jnp.float32)
    out = jax.block_until_ready(rmsnorm(x, scale[:S, :]))          # forward slices scale[:S, :]
    assert jnp.allclose(out, reference(x, scale[:S, :]), rtol=1e-5, atol=1e-5)

    # --- Test 2: fused path, raw (S, D) layout (S*D % 128 != 0), bf16 activations.
    B, S, D = 2, 9, 40
    xb = jax.random.normal(k3, (B, S, D), dtype=jnp.float32).astype(jnp.bfloat16)
    scale = 1.0 + 0.1 * jax.random.normal(k4, (S, D), dtype=jnp.float32)
    out = jax.block_until_ready(rmsnorm(xb, scale))
    assert jnp.allclose(out.astype(jnp.float32), reference(xb, scale), rtol=3e-2, atol=3e-2)

    # --- Test 3: two-pass fallback, B=1 (dual-core reduce split), ragged reduce/apply tiles.
    B, S, D = 1, 42, 128
    x = jax.random.normal(k5, (B, S, D), dtype=jnp.float32)
    scale = jnp.ones((S, D), dtype=jnp.float32)
    out = jax.block_until_ready(
        rmsnorm(x, scale, force_two_pass=True,
                reduce_block_rows=8, apply_block_rows=16, chunk_rows=8))
    assert jnp.allclose(out, reference(x, scale), rtol=1e-5, atol=1e-5)

    # --- Test 4: two-pass fallback, B>1 (no split), exact tiling.
    B, S, D = 2, 24, 128
    x = jax.random.normal(k1, (B, S, D), dtype=jnp.float32)
    scale = 1.0 + 0.1 * jax.random.normal(k2, (S, D), dtype=jnp.float32)
    out = jax.block_until_ready(
        rmsnorm(x, scale, force_two_pass=True,
                reduce_block_rows=8, apply_block_rows=8, chunk_rows=8))
    assert jnp.allclose(out, reference(x, scale), rtol=1e-5, atol=1e-5)

    print("KERNEL_OK")
</pallas_src>

<mosaic_0001>
module attributes {stable_mosaic.version = 11 : i64} {
  func.func @_fused_kernel(%arg0: i32, %arg1: memref<1x2x128xf32, #tpu.memory_space<vmem>>, %arg2: memref<2x128xf32, #tpu.memory_space<vmem>>, %arg3: memref<1x2x128xf32, #tpu.memory_space<vmem>>) attributes {dimension_semantics = [#tpu.dimension_semantics<parallel>], iteration_bounds = array<i64: 2>, scalar_prefetch = 0 : i64, scratch_operands = 0 : i64, tpu.core_type = #tpu.core_type<tc>, window_params = [{transform_indices = @transform_0, window_bounds = array<i64: 1, 2, 128>}, {pipeline_mode = #tpu.pipeline_mode<synchronous>, transform_indices = @transform_1, window_bounds = array<i64: 2, 128>}, {transform_indices = @transform_2, window_bounds = array<i64: 1, 2, 128>}]} {
    %cst = arith.constant 0.000000e+00 : f32
    %0 = vector.broadcast %cst : f32 to vector<1x128xf32>
    %c0 = arith.constant 0 : index
    %c0_0 = arith.constant 0 : index
    %c0_1 = arith.constant 0 : index
    %1 = vector.load %arg1[%c0, %c0_0, %c0_1] : memref<1x2x128xf32, #tpu.memory_space<vmem>>, vector<1x2x128xf32>
    %2 = vector.shape_cast %1 : vector<1x2x128xf32> to vector<2x128xf32>
    %3 = arith.mulf %2, %2 : vector<2x128xf32>
    %cst_2 = arith.constant dense<0.000000e+00> : vector<128xf32>
    %4 = vector.multi_reduction <add>, %3, %cst_2 [0] : vector<2x128xf32> to vector<128xf32>
    %5 = vector.shape_cast %4 : vector<128xf32> to vector<1x128xf32>
    %6 = arith.addf %0, %5 : vector<1x128xf32>
    %7 = vector.shape_cast %6 : vector<1x128xf32> to vector<1x1x128xf32>
    %cst_3 = arith.constant dense<0.000000e+00> : vector<1xf32>
    %8 = vector.multi_reduction <add>, %7, %cst_3 [1, 2] : vector<1x1x128xf32> to vector<1xf32>
    %9 = vector.shape_cast %8 : vector<1xf32> to vector<1x1x1xf32>
    %10 = vector.extract %9[0, 0, 0] : f32 from vector<1x1x1xf32>
    %cst_4 = arith.constant 3.906250e-03 : f32
    %11 = arith.mulf %10, %cst_4 : f32
    %12 = math.rsqrt %11 : f32
    %c0_5 = arith.constant 0 : index
    %c0_6 = arith.constant 0 : index
    %c0_7 = arith.constant 0 : index
    %13 = vector.load %arg1[%c0_5, %c0_6, %c0_7] : memref<1x2x128xf32, #tpu.memory_space<vmem>>, vector<1x2x128xf32>
    %14 = vector.shape_cast %13 : vector<1x2x128xf32> to vector<2x128xf32>
    %c0_8 = arith.constant 0 : index
    %c0_9 = arith.constant 0 : index
    %15 = vector.load %arg2[%c0_8, %c0_9] : memref<2x128xf32, #tpu.memory_space<vmem>>, vector<2x128xf32>
    %16 = arith.mulf %14, %15 : vector<2x128xf32>
    %17 = vector.broadcast %12 : f32 to vector<2x128xf32>
    %18 = arith.mulf %16, %17 : vector<2x128xf32>
    %c0_10 = arith.constant 0 : index
    %c0_11 = arith.constant 0 : index
    %c0_12 = arith.constant 0 : index
    %19 = vector.load %arg3[%c0_10, %c0_11, %c0_12] : memref<1x2x128xf32, #tpu.memory_space<vmem>>, vector<1x2x128xf32>
    %20 = vector.shape_cast %19 : vector<1x2x128xf32> to vector<2x128xf32>
    %21 = vector.shape_cast %18 : vector<2x128xf32> to vector<1x2x128xf32>
    tpu.vector_store %arg3[%c0_10, %c0_11, %c0_12], %21 {strides = array<i32>} : memref<1x2x128xf32, #tpu.memory_space<vmem>>, vector<1x2x128xf32>,
    return
  }
  func.func @transform_0(%arg0: i32) -> (i32, i32, i32) {
    %c0_i32 = arith.constant 0 : i32
    %c0_i32_0 = arith.constant 0 : i32
    %c0_i32_1 = arith.constant 0 : i32
    return %arg0, %c0_i32, %c0_i32_0 : i32, i32, i32
  }
  func.func @transform_1(%arg0: i32) -> (i32, i32) {
    %c0_i32 = arith.constant 0 : i32
    %c0_i32_0 = arith.constant 0 : i32
    %c0_i32_1 = arith.constant 0 : i32
    return %c0_i32, %c0_i32_0 : i32, i32
  }
  func.func @transform_2(%arg0: i32) -> (i32, i32, i32) {
    %c0_i32 = arith.constant 0 : i32
    %c0_i32_0 = arith.constant 0 : i32
    %c0_i32_1 = arith.constant 0 : i32
    return %arg0, %c0_i32, %c0_i32_0 : i32, i32, i32
  }
}

</mosaic_0001>

<llo_original>
// kernel: tpu_custom_call.1
$region0: #{tpu_custom_call.1}
  #allocation0 [shape = 'u32[]', space=smem, size = 0x4, offset = 0x4, fixed_abs, tag = 'smem constant byte address 0x4 - core index']
  #allocation1 [shape = 'u32[144,128]{1,0:T(1,128)}', space=vmem, size = 0x12000, scoped, tag = 'internal scratch']
  %s0 = inlined_call_operand.hbm [shape: f32[2,2,128], index: 0, kind: input, shape index: {}]
  %s1 = inlined_call_operand.vmem [shape: f32[2,128], index: 1, kind: input, shape index: {}]
  %s2 = inlined_call_operand.hbm [shape: f32[2,2,128], index: 2, kind: output, shape index: {}]
  %s3 = sld [smem:[#allocation0]]
  $region45: #{tpu_custom_call.1} parent=0
    _
  %s5 = ssub.s32 1, %s3
  %s6 = scalar_select 0, %s5, %s3
  $region1: #{tpu_custom_call.1} parent=0
    #allocation2 [shape = 'u8[2048]{0}', space=vmem, size = 0x800, scoped, tag = 'input window, operand 0']
    #allocation3 [shape = 's32[2]{0}', space=sflag, size = 0x8, scoped, tag = 'scoped memory for tpu_custom_call.1']
    #allocation4 [shape = 's32[2]{0}', space=sflag, size = 0x8, scoped, tag = 'scoped memory for tpu_custom_call.1']
    #allocation5 [shape = 'u8[2048]{0}', space=vmem, size = 0x800, scoped, tag = 'output window, operand 0']
    %7 = vsyncpa [#allocation3], 0
    %s8 = scalar_lea.sflag [#allocation3], 1
    %9 = vsyncpa %s8, 0
    %10 = vsyncpa [#allocation4], 0
    %s11 = scalar_lea.sflag [#allocation4], 1
    %12 = vsyncpa %s11, 0
    loop: start=0, step=1, limit=4
    $region2: #{tpu_custom_call.1} parent=1 // loop_pre_header
      _
    $region3: #{tpu_custom_call.1} parent=1 // loop_header
      %s14 = sphi 0, %s18
      %p15 = scmp.ge.s32.totalorder %s14, 4
      %s24 = sphi 0, %s26
      %s27 = sphi 0, %s24
      %s28 = sphi 0, %s27
      %s44 = sphi 0, %s28
      %s48 = sphi 0, %s48
      %s50 = sphi 0, %s48
      %s51 = sphi 0, %s50
      %s65 = sphi 0, %s51
      %s71 = sphi 0, %s73
      %s74 = sphi 0, %s71
      %s75 = sphi 0, %s74
      %s91 = sphi 0, %s75
    $region4: #{tpu_custom_call.1} parent=1 // loop_header_branch
      %17 = sbr.rel (%p15) target = $region8
    $region5: #{tpu_custom_call.1} parent=1 // loop_body
      %s19 = ssub.s32 %s14, 1
      %s20 = ssub.s32 %s14, 2
      %s21 = sadd.s32 %s14, 1
      %s22 = ssub.s32 %s14, %s21
      %p23 = scmp.eq.s32.totalorder %s22, 0
      %s25 = sadd.s32 %s24, 1
      %s26 = scalar_select %p23, %s24, %s25
      %p29 = pneg %p23
      %p30 = scmp.eq.s32.totalorder %s14, 1
      %p31 = por %p29, %p30
      %p32 = scmp.ne.s32.totalorder %s24, %s27
      %p33 = scmp.eq.s32.totalorder %s14, 0
      %p34 = por %p32, %p33
      %p35 = scmp.ne.s32.totalorder %s24, %s27
      %p36 = scmp.eq.s32.totalorder %s19, 1
      %p37 = por %p35, %p36
      %p38 = scmp.ne.s32.totalorder %s27, %s28
      %p39 = scmp.eq.s32.totalorder %s19, 0
      %p40 = por %p38, %p39
      %p41 = scmp.ne.s32.totalorder %s27, %s28
      %p42 = scmp.eq.s32.totalorder %s20, 1
      %p43 = por %p41, %p42
      %p45 = scmp.ne.s32.totalorder %s28, %s44
      %p46 = scmp.eq.s32.totalorder %s20, 0
      %p47 = por %p45, %p46
      %s49 = sadd.s32 %s48, 1
      %p52 = scmp.eq.s32.totalorder %s14, 1
      %p53 = scmp.ne.s32.totalorder %s48, %s50
      %p54 = scmp.eq.s32.totalorder %s14, 0
      %p55 = por %p53, %p54
      %p56 = scmp.ne.s32.totalorder %s48, %s50
      %p57 = scmp.eq.s32.totalorder %s19, 1
      %p58 = por %p56, %p57
      %p59 = scmp.ne.s32.totalorder %s50, %s51
      %p60 = scmp.eq.s32.totalorder %s19, 0
      %p61 = por %p59, %p60
      %p62 = scmp.ne.s32.totalorder %s50, %s51
      %p63 = scmp.eq.s32.totalorder %s20, 1
      %p64 = por %p62, %p63
      %p66 = scmp.ne.s32.totalorder %s51, %s65
      %p67 = scmp.eq.s32.totalorder %s20, 0
      %p68 = por %p66, %p67
      %s69 = ssub.s32 %s14, %s21
      %p70 = scmp.eq.s32.totalorder %s69, 0
      %s72 = sadd.s32 %s71, 1
      %s73 = scalar_select %p70, %s71, %s72
      %p76 = pneg %p70
      %p77 = scmp.eq.s32.totalorder %s14, 1
      %p78 = por %p76, %p77
      %p79 = scmp.ne.s32.totalorder %s71, %s74
      %p80 = scmp.eq.s32.totalorder %s14, 0
      %p81 = por %p79, %p80
      %p82 = scmp.ne.s32.totalorder %s71, %s74
      %p83 = scmp.eq.s32.totalorder %s19, 1
      %p84 = por %p82, %p83
      %p85 = scmp.ne.s32.totalorder %s74, %s75
      %p86 = scmp.eq.s32.totalorder %s19, 0
      %p87 = por %p85, %p86
      %p88 = scmp.ne.s32.totalorder %s74, %s75
      %p89 = scmp.eq.s32.totalorder %s20, 1
      %p90 = por %p88, %p89
      %p92 = scmp.ne.s32.totalorder %s75, %s91
      %p93 = scmp.eq.s32.totalorder %s20, 0
      %p94 = por %p92, %p93
      %p95 = scmp.le.s32.totalorder 1, %s14
      %p96 = scmp.lt.s32.totalorder %s14, 3
      %p97 = pnand %p95, %p96
      %p98 = pneg %p97
      // Predicated region
      $region9: #{tpu_custom_call.1} parent=5 // pred_check
        _
      $region10: #{tpu_custom_call.1} parent=5 // pred_check_branch
        %100 = sbr.rel (%p97) target = $region12
      $region11: #{tpu_custom_call.1} parent=5 // pred_region
        %s101 = ssub.s32 %s14, 1
        // Predicated region
        $region13: #{tpu_custom_call.1} parent=11 // pred_check
          %p102 = pneg %p61
        $region14: #{tpu_custom_call.1} parent=11 // pred_check_branch
          %104 = sbr.rel (%p102) target = $region16
        $region15: #{tpu_custom_call.1} parent=11 // pred_region
          _
        $region16: #{tpu_custom_call.1} parent=11 // pred_fallthru
          _
      $region12: #{tpu_custom_call.1} parent=5 // pred_fallthru
        _
      %p105 = scmp.lt.s32.totalorder %s14, 2
      // Predicated region
      $region17: #{tpu_custom_call.1} parent=5 // pred_check
        %p106 = pneg %p105
      $region18: #{tpu_custom_call.1} parent=5 // pred_check_branch
        %108 = sbr.rel (%p106) target = $region20
      $region19: #{tpu_custom_call.1} parent=5 // pred_region
        // Predicated region
        $region21: #{tpu_custom_call.1} parent=19 // pred_check
          %p109 = pneg %p34
        $region22: #{tpu_custom_call.1} parent=19 // pred_check_branch
          %111 = sbr.rel (%p109) target = $region24
        $region23: #{tpu_custom_call.1} parent=19 // pred_region
          %s112 = sand.u32 %s24, 1
          %s113 = scalar_lea.sflag [#allocation3], %s112
          %s114 = sand.u32 %s24, 1
          %s115 = smul.addr %s114, 2
          %s116 = scalar_lea.vmem [#allocation2], %s115
          %s118 = ssub.s32 32, 32
          %119 = vsyncadd %s113, %s118
          %s120 = smul.addr %s14, 32
          %s121 = scalar_lea.hbm %s0, %s120
          %s123 = sshll.u32 %s116, 4
          %s124 = int_to_ptr.vmem [resolvable:$true] %s123
          %126 = dma.hbm_to_vmem [thread:$0]  %s121, 32, %s124, %s113
        $region24: #{tpu_custom_call.1} parent=19 // pred_fallthru
          _
      $region20: #{tpu_custom_call.1} parent=5 // pred_fallthru
        _
      %p127 = scmp.le.s32.totalorder 1, %s14
      %p128 = scmp.lt.s32.totalorder %s14, 3
      %p129 = pnand %p127, %p128
      %p130 = pneg %p129
      // Predicated region
      $region25: #{tpu_custom_call.1} parent=5 // pred_check
        _
      $region26: #{tpu_custom_call.1} parent=5 // pred_check_branch
        %132 = sbr.rel (%p129) target = $region28
      $region27: #{tpu_custom_call.1} parent=5 // pred_region
        %s133 = ssub.s32 %s14, 1
        %s134 = sand.u32 %s27, 1
        %s135 = scalar_lea.sflag [#allocation3], %s134
        %s136 = sand.u32 %s27, 1
        %s137 = smul.addr %s136, 2
        %s138 = scalar_lea.vmem [#allocation2], %s137
        // Predicated region
        $region29: #{tpu_custom_call.1} parent=27 // pred_check
          %p139 = pneg %p40
        $region30: #{tpu_custom_call.1} parent=27 // pred_check_branch
          %141 = sbr.rel (%p139) target = $region32
        $region31: #{tpu_custom_call.1} parent=27 // pred_region
          %142 = dma.done %s135, 32
        $region32: #{tpu_custom_call.1} parent=27 // pred_fallthru
          _
        %s143 = sand.u32 %s27, 1
        %s144 = scalar_lea.sflag [#allocation3], %s143
        %s145 = sand.u32 %s27, 1
        %s146 = smul.addr %s145, 2
        %s147 = scalar_lea.vmem [#allocation2], %s146
        %p148 = pneg %p40
        %p149 = pneg %p37
        %p150 = pneg %p61
        %p151 = pneg %p58
        %p152 = pneg %p87
        %p153 = pneg %p84
        %s154 = sand.u32 %s74, 1
        %s155 = scalar_lea.sflag [#allocation4], %s154
        %s156 = sand.u32 %s74, 1
        %s157 = smul.addr %s156, 2
        %s158 = scalar_lea.vmem [#allocation5], %s157
        %v159 = vld [vmem:[%s138] sm:$0x3]
        %v160 = vmul.f32 %v159, %v159
        %vm161 = vcmask 1041408
        %v162 = vsel %vm161, %v160, 0.0
        %v163 = vrot.slane %v162, 4
        %v164 = vadd.f32 %v162, %v163
        %v165 = vrot.slane %v164, 2
        %v166 = vadd.f32 %v164, %v165
        %v167 = vrot.slane %v166, 1
        %v168 = vadd.f32 %v166, %v167
        %v169 = vadd.f32 %v168, 0.0
        %vm170 = vcmask 1040384
        %v171 = vsel %vm170, %v169, 0.0
        %172 = vadd.xlane.f32.xlu0 %v171
        %v173 = vpop.xlane.xlu0 %172
        %v174 = vrot.slane %v173, 4
        %v175 = vadd.f32 %v173, %v174
        %v176 = vrot.slane %v175, 2
        %v177 = vadd.f32 %v175, %v176
        %v178 = vrot.slane %v177, 1
        %v179 = vadd.f32 %v177, %v178
        %s180 = vtos %v179
        %s181 = smul.f32 %s180, 0.00390625
        %v182 = vstv %s181
        %v183 = vrsqrt.pop %v182
        %s184 = vtos %v183
        %v185 = vld [vmem:[%s1] sm:$0x3]
        %v186 = vmul.f32 %v159, %v185
        %v187 = vstv %s184
        %v188 = vmul.f32 %v186, %v187
        %189 = vst [vmem:[%s158] sm:$0x3] %v188
        %s190 = sand.u32 %s74, 1
        %s191 = scalar_lea.sflag [#allocation4], %s190
        %s192 = sand.u32 %s74, 1
        %s193 = smul.addr %s192, 2
        %s194 = scalar_lea.vmem [#allocation5], %s193
        // Predicated region
        $region33: #{tpu_custom_call.1} parent=27 // pred_check
          %p195 = pneg %p84
        $region34: #{tpu_custom_call.1} parent=27 // pred_check_branch
          %197 = sbr.rel (%p195) target = $region36
        $region35: #{tpu_custom_call.1} parent=27 // pred_region
          %s199 = ssub.s32 32, 32
          %200 = vsyncadd %s191, %s199
          %s201 = smul.addr %s19, 32
          %s202 = scalar_lea.hbm %s2, %s201
          %s204 = sshll.u32 %s194, 4
          %s205 = int_to_ptr.vmem [resolvable:$true] %s204
          %207 = dma.vmem_to_hbm [thread:$0]  %s205, 32, %s202, %s191
        $region36: #{tpu_custom_call.1} parent=27 // pred_fallthru
          _
      $region28: #{tpu_custom_call.1} parent=5 // pred_fallthru
        _
      %p208 = scmp.le.s32.totalorder 2, %s14
      // Predicated region
      $region37: #{tpu_custom_call.1} parent=5 // pred_check
        %p209 = pneg %p208
      $region38: #{tpu_custom_call.1} parent=5 // pred_check_branch
        %211 = sbr.rel (%p209) target = $region40
      $region39: #{tpu_custom_call.1} parent=5 // pred_region
        %s212 = ssub.s32 %s14, 2
        // Predicated region
        $region41: #{tpu_custom_call.1} parent=39 // pred_check
          %p213 = pneg %p90
        $region42: #{tpu_custom_call.1} parent=39 // pred_check_branch
          %215 = sbr.rel (%p213) target = $region44
        $region43: #{tpu_custom_call.1} parent=39 // pred_region
          %s216 = sand.u32 %s75, 1
          %s217 = scalar_lea.sflag [#allocation4], %s216
          %s218 = sand.u32 %s75, 1
          %s219 = smul.addr %s218, 2
          %s220 = scalar_lea.vmem [#allocation5], %s219
          %221 = dma.done %s217, 32
        $region44: #{tpu_custom_call.1} parent=39 // pred_fallthru
          _
      $region40: #{tpu_custom_call.1} parent=5 // pred_fallthru
        _
    $region6: #{tpu_custom_call.1} parent=1 // loop_footer
      %s18 = sadd.s32 1, %s14
    $region7: #{tpu_custom_call.1} parent=1 // loop_footer_branch
      %13 = sbr.rel target = $region3
    $region8: #{tpu_custom_call.1} parent=1 // loop_exit
      _
    %222 = vsyncpa [#allocation3], 1
    %s223 = scalar_lea.sflag [#allocation3], 1
    %224 = vsyncpa %s223, 1
    %225 = vsyncpa [#allocation4], 1
    %s226 = scalar_lea.sflag [#allocation4], 1
    %227 = vsyncpa %s226, 1

</llo_original>
